<compile_context>
chip_gen: v5e
topology: v5e:2x2
jax: 0.10.0
libtpu: 0.0.40
codegen_flags: <defaults>
</compile_context>

<pallas_src>
import jax
import jax.numpy as jnp
from jax.experimental import pallas as pl

LANE = 128      # lane (last-dim) width of a vreg
SUBLANE = 8     # sublane (second-to-last dim) width of a vreg


def _round_up(x, m):
    return ((x + m - 1) // m) * m


# ----------------------------------------------------------------------------
# Fused kernel: rep1 = tanh(cls1 @ W + b); rep2 = tanh(cls2 @ W + b);
#               sim  = rep1 @ rep2.T
# All operands live in VMEM as single lane/sublane-aligned blocks.
# ----------------------------------------------------------------------------
def _classifier_kernel(c1_ref, c2_ref, w_ref, b_ref,
                       rep1_ref, rep2_ref, sim_ref):
    # c1_ref: [B1p, HinP] bf16   c2_ref: [B2p, HinP] bf16
    # w_ref:  [HinP, HP]  bf16   b_ref:  [1, HP]     f32
    # rep1_ref: [B1p, HP] f32    rep2_ref: [B2p, HP] f32
    # sim_ref:  [B1p, B2p] f32
    w = w_ref[...]                                    # bf16 MXU operand
    bias = b_ref[...]                                 # f32, broadcast over rows

    # Synthetic encoder (CLS rows only); bf16 matmul, f32 accumulate/epilogue.
    r1 = jnp.tanh(jnp.dot(c1_ref[...], w, preferred_element_type=jnp.float32)
                  + bias)
    r2 = jnp.tanh(jnp.dot(c2_ref[...], w, preferred_element_type=jnp.float32)
                  + bias)
    rep1_ref[...] = r1
    rep2_ref[...] = r2

    # sim = rep1 @ rep2.T  (contract the hidden axis), bf16 in / f32 out.
    sim_ref[...] = jax.lax.dot_general(
        r1.astype(jnp.bfloat16), r2.astype(jnp.bfloat16),
        dimension_numbers=(((1,), (1,)), ((), ())),
        preferred_element_type=jnp.float32,
    )


def classifier_forward(emb1, emb2, w, b):
    """Fused Classifier hot path.

    emb1: [B1, S, Hin], emb2: [B2, S, Hin] synthetic token embeddings
    w:    [Hin, H], b: [1, H] synthetic encoder parameters
    Returns (rep1 [B1, H], rep2 [B2, H], sim [B1, B2]) in f32.
    """
    # TODO(synk): tokenizer + pretrained AutoModel have no Pallas equivalent;
    # synthetic token embeddings + one dense layer stand in for the encoder.
    B1, _, Hin = emb1.shape
    B2 = emb2.shape[0]
    H = w.shape[1]

    # Only the CLS (token 0) row is consumed downstream -- slice it here so
    # the kernel never touches the other S-1 sequence positions.
    cls1 = emb1[:, 0, :]                              # [B1, Hin]
    cls2 = emb2[:, 0, :]                              # [B2, Hin]

    # Lane/sublane-dense padded shapes.  Zero padding is numerically inert:
    # padded Hin lanes hit zero W rows; padded H lanes get zero W columns and
    # zero bias -> tanh(0) = 0 -> contribute nothing to the sim dot product.
    B1p = _round_up(max(B1, SUBLANE), SUBLANE)
    B2p = _round_up(max(B2, LANE), LANE)              # lane-dense sim output
    HinP = _round_up(max(Hin, LANE), LANE)
    HP = _round_up(max(H, LANE), LANE)

    c1 = jnp.zeros((B1p, HinP), jnp.bfloat16).at[:B1, :Hin].set(
        cls1.astype(jnp.bfloat16))
    c2 = jnp.zeros((B2p, HinP), jnp.bfloat16).at[:B2, :Hin].set(
        cls2.astype(jnp.bfloat16))
    wp = jnp.zeros((HinP, HP), jnp.bfloat16).at[:Hin, :H].set(
        w.astype(jnp.bfloat16))
    bp = jnp.zeros((1, HP), jnp.float32).at[:, :H].set(b.astype(jnp.float32))

    rep1_p, rep2_p, sim_p = pl.pallas_call(
        _classifier_kernel,
        out_shape=(
            jax.ShapeDtypeStruct((B1p, HP), jnp.float32),
            jax.ShapeDtypeStruct((B2p, HP), jnp.float32),
            jax.ShapeDtypeStruct((B1p, B2p), jnp.float32),
        ),
        in_specs=[
            pl.BlockSpec((B1p, HinP), lambda: (0, 0)),
            pl.BlockSpec((B2p, HinP), lambda: (0, 0)),
            pl.BlockSpec((HinP, HP), lambda: (0, 0)),
            pl.BlockSpec((1, HP), lambda: (0, 0)),
        ],
        out_specs=(
            pl.BlockSpec((B1p, HP), lambda: (0, 0)),
            pl.BlockSpec((B2p, HP), lambda: (0, 0)),
            pl.BlockSpec((B1p, B2p), lambda: (0, 0)),
        ),
    )(c1, c2, wp, bp)

    # Strip padding (plain-JAX glue on tiny tensors).
    return rep1_p[:B1, :H], rep2_p[:B2, :H], sim_p[:B1, :B2]


if __name__ == "__main__":
    key = jax.random.PRNGKey(0)
    k_emb1, k_emb2, k_w, k_b = jax.random.split(key, 4)

    # Small shapes consistent with the module's use:
    #   two "batches of texts" -> token embeddings [B, seq, hidden_in]
    B1, B2, S, H_IN, H = 4, 3, 8, 32, 32

    emb1 = jax.random.normal(k_emb1, (B1, S, H_IN), dtype=jnp.float32)
    emb2 = jax.random.normal(k_emb2, (B2, S, H_IN), dtype=jnp.float32)

    # Deterministic synthetic encoder parameters.
    w = jax.random.normal(k_w, (H_IN, H), dtype=jnp.float32) * 0.1
    b = jax.random.normal(k_b, (1, H), dtype=jnp.float32) * 0.1

    rep1, rep2, sim = classifier_forward(emb1, emb2, w, b)
    sim = jax.block_until_ready(sim)

    # Reference with the same bf16-input / f32-accumulate computation.
    cls1_b = emb1[:, 0, :].astype(jnp.bfloat16)
    cls2_b = emb2[:, 0, :].astype(jnp.bfloat16)
    w_b = w.astype(jnp.bfloat16)
    r1_ref = jnp.tanh(
        jnp.dot(cls1_b, w_b, preferred_element_type=jnp.float32) + b)
    r2_ref = jnp.tanh(
        jnp.dot(cls2_b, w_b, preferred_element_type=jnp.float32) + b)
    sim_ref = jax.lax.dot_general(
        r1_ref.astype(jnp.bfloat16), r2_ref.astype(jnp.bfloat16),
        dimension_numbers=(((1,), (1,)), ((), ())),
        preferred_element_type=jnp.float32)

    assert rep1.shape == (B1, H)
    assert rep2.shape == (B2, H)
    assert sim.shape == (B1, B2)
    assert jnp.allclose(rep1, r1_ref, atol=1e-2, rtol=1e-2)
    assert jnp.allclose(rep2, r2_ref, atol=1e-2, rtol=1e-2)
    assert jnp.allclose(sim, sim_ref, atol=1e-2, rtol=1e-2)

    print("KERNEL_OK")
</pallas_src>

<mosaic_0001>
module attributes {stable_mosaic.version = 11 : i64} {
  func.func @_classifier_kernel(%arg0: memref<8x128xbf16, #tpu.memory_space<vmem>>, %arg1: memref<128x128xbf16, #tpu.memory_space<vmem>>, %arg2: memref<128x128xbf16, #tpu.memory_space<vmem>>, %arg3: memref<1x128xf32, #tpu.memory_space<vmem>>, %arg4: memref<8x128xf32, #tpu.memory_space<vmem>>, %arg5: memref<128x128xf32, #tpu.memory_space<vmem>>, %arg6: memref<8x128xf32, #tpu.memory_space<vmem>>) attributes {dimension_semantics = [], scalar_prefetch = 0 : i64, scratch_operands = 0 : i64, tpu.core_type = #tpu.core_type<tc>} {
    %c0 = arith.constant 0 : index
    %c0_0 = arith.constant 0 : index
    %0 = vector.load %arg2[%c0, %c0_0] : memref<128x128xbf16, #tpu.memory_space<vmem>>, vector<128x128xbf16>
    %c0_1 = arith.constant 0 : index
    %c0_2 = arith.constant 0 : index
    %1 = vector.load %arg3[%c0_1, %c0_2] : memref<1x128xf32, #tpu.memory_space<vmem>>, vector<1x128xf32>
    %c0_3 = arith.constant 0 : index
    %c0_4 = arith.constant 0 : index
    %2 = vector.load %arg0[%c0_3, %c0_4] : memref<8x128xbf16, #tpu.memory_space<vmem>>, vector<8x128xbf16>
    %cst = arith.constant dense<0.000000e+00> : vector<8x128xf32>
    %3 = tpu.matmul %2, %0, %cst {dimension_numbers = #tpu.dot_dimension_numbers<[1], [0], [0], [1], [0, 0, 1, 1], [], []>} : vector<8x128xbf16>, vector<128x128xbf16>, vector<8x128xf32> -> vector<8x128xf32>
    %4 = vector.broadcast %1 : vector<1x128xf32> to vector<8x128xf32>
    %5 = arith.addf %3, %4 : vector<8x128xf32>
    %6 = math.tanh %5 : vector<8x128xf32>
    %c0_5 = arith.constant 0 : index
    %c0_6 = arith.constant 0 : index
    %7 = vector.load %arg1[%c0_5, %c0_6] : memref<128x128xbf16, #tpu.memory_space<vmem>>, vector<128x128xbf16>
    %cst_7 = arith.constant dense<0.000000e+00> : vector<128x128xf32>
    %8 = tpu.matmul %7, %0, %cst_7 {dimension_numbers = #tpu.dot_dimension_numbers<[1], [0], [0], [1], [0, 0, 1, 1], [], []>} : vector<128x128xbf16>, vector<128x128xbf16>, vector<128x128xf32> -> vector<128x128xf32>
    %9 = vector.broadcast %1 : vector<1x128xf32> to vector<128x128xf32>
    %10 = arith.addf %8, %9 : vector<128x128xf32>
    %11 = math.tanh %10 : vector<128x128xf32>
    %c0_8 = arith.constant 0 : index
    %c0_9 = arith.constant 0 : index
    %12 = vector.load %arg4[%c0_8, %c0_9] : memref<8x128xf32, #tpu.memory_space<vmem>>, vector<8x128xf32>
    tpu.vector_store %arg4[%c0_8, %c0_9], %6 {strides = array<i32>} : memref<8x128xf32, #tpu.memory_space<vmem>>, vector<8x128xf32>,
    %c0_10 = arith.constant 0 : index
    %c0_11 = arith.constant 0 : index
    %13 = vector.load %arg5[%c0_10, %c0_11] : memref<128x128xf32, #tpu.memory_space<vmem>>, vector<128x128xf32>
    tpu.vector_store %arg5[%c0_10, %c0_11], %11 {strides = array<i32>} : memref<128x128xf32, #tpu.memory_space<vmem>>, vector<128x128xf32>,
    %14 = arith.truncf %6 : vector<8x128xf32> to vector<8x128xbf16>
    %15 = arith.truncf %11 : vector<128x128xf32> to vector<128x128xbf16>
    %cst_12 = arith.constant dense<0.000000e+00> : vector<8x128xf32>
    %16 = tpu.matmul %14, %15, %cst_12 {dimension_numbers = #tpu.dot_dimension_numbers<[1], [1], [0], [0], [0, 0, 1, 0], [], []>} : vector<8x128xbf16>, vector<128x128xbf16>, vector<8x128xf32> -> vector<8x128xf32>
    %c0_13 = arith.constant 0 : index
    %c0_14 = arith.constant 0 : index
    %17 = vector.load %arg6[%c0_13, %c0_14] : memref<8x128xf32, #tpu.memory_space<vmem>>, vector<8x128xf32>
    tpu.vector_store %arg6[%c0_13, %c0_14], %16 {strides = array<i32>} : memref<8x128xf32, #tpu.memory_space<vmem>>, vector<8x128xf32>,
    return
  }
}

</mosaic_0001>

<llo_original>
// kernel: tpu_custom_call.1
$region0: #{tpu_custom_call.1}
  #allocation0 [shape = 'u32[]', space=smem, size = 0x4, offset = 0x4, fixed_abs, tag = 'smem constant byte address 0x4 - core index']
  #allocation1 [shape = 'u32[72,128]{1,0:T(1,128)}', space=vmem, size = 0x9000, scoped, tag = 'internal scratch']
  %s0 = inlined_call_operand.hbm [shape: bf16[8,128], index: 0, kind: input, shape index: {}]
  %s1 = inlined_call_operand.hbm [shape: bf16[128,128], index: 1, kind: input, shape index: {}]
  %s2 = inlined_call_operand.hbm [shape: bf16[128,128], index: 2, kind: input, shape index: {}]
  %s3 = inlined_call_operand.vmem [shape: f32[1,128], index: 3, kind: input, shape index: {}]
  %s4 = inlined_call_operand.hbm [shape: f32[8,128], index: 4, kind: output, shape index: {0}]
  %s5 = inlined_call_operand.hbm [shape: f32[128,128], index: 5, kind: output, shape index: {1}]
  %s6 = inlined_call_operand.hbm [shape: f32[8,128], index: 6, kind: output, shape index: {2}]
  %7 = xla_tuple %s4, %s5, %s6
  %s8 = sld [smem:[#allocation0]]
  $region54: #{tpu_custom_call.1} parent=0
    _
  %s10 = ssub.s32 1, %s8
  %s11 = scalar_select 0, %s10, %s8
  $region1: #{tpu_custom_call.1} parent=0
    #allocation2 [shape = 'u8[2048]{0}', space=vmem, size = 0x800, scoped, tag = 'input window, operand 0, single buffered']
    #allocation3 [shape = 's32[1]{0}', space=sflag, size = 0x4, scoped, tag = 'scoped memory for tpu_custom_call.1']
    #allocation4 [shape = 's32[1]{0}', space=sflag, size = 0x4, scoped, tag = 'scoped memory for tpu_custom_call.1']
    #allocation5 [shape = 'u8[32768]{0}', space=vmem, size = 0x8000, scoped, tag = 'input window, operand 1, single buffered']
    #allocation6 [shape = 's32[1]{0}', space=sflag, size = 0x4, scoped, tag = 'scoped memory for tpu_custom_call.1']
    #allocation7 [shape = 'u8[32768]{0}', space=vmem, size = 0x8000, scoped, tag = 'input window, operand 2, single buffered']
    #allocation8 [shape = 'u8[4096]{0}', space=vmem, size = 0x1000, scoped, tag = 'output window, operand 0, single buffered']
    #allocation9 [shape = 'u8[65536]{0}', space=vmem, size = 0x10000, scoped, tag = 'output window, operand 1, single buffered']
    #allocation10 [shape = 's32[1]{0}', space=sflag, size = 0x4, scoped, tag = 'scoped memory for tpu_custom_call.1']
    #allocation11 [shape = 'u8[4096]{0}', space=vmem, size = 0x1000, scoped, tag = 'output window, operand 2, single buffered']
    %12 = vsyncpa [#allocation3], 0
    %13 = vsyncpa [#allocation6], 0
    %14 = vsyncpa [#allocation4], 0
    %15 = vsyncpa [#allocation10], 0
    // Predicated region
    $region2: #{tpu_custom_call.1} parent=1 // pred_check
      _
    $region3: #{tpu_custom_call.1} parent=1 // pred_check_branch
      %17 = sbr.rel (0) target = $region5
    $region4: #{tpu_custom_call.1} parent=1 // pred_region
      %19 = vsyncadd [#allocation3], 0
      %s21 = sshll.u32 %s0, 4
      %s22 = int_to_ptr.hbm [resolvable:$true] %s21
      %s23 = sshll.u32 [#allocation2], 4
      %s24 = int_to_ptr.vmem [resolvable:$true] %s23
      %26 = dma.hbm_to_vmem [thread:$0]  %s22, 64, %s24, [#allocation3]
    $region5: #{tpu_custom_call.1} parent=1 // pred_fallthru
      _
    // Predicated region
    $region6: #{tpu_custom_call.1} parent=1 // pred_check
      _
    $region7: #{tpu_custom_call.1} parent=1 // pred_check_branch
      %28 = sbr.rel (0) target = $region9
    $region8: #{tpu_custom_call.1} parent=1 // pred_region
      %30 = vsyncadd [#allocation6], 0
      %s31 = sshll.u32 %s1, 4
      %s32 = int_to_ptr.hbm [resolvable:$true] %s31
      %s33 = sshll.u32 [#allocation5], 4
      %s34 = int_to_ptr.vmem [resolvable:$true] %s33
      %39 = dma.hbm_to_vmem [thread:$0]  %s32, 1024, %s34, [#allocation6], 64, 64, 4
    $region9: #{tpu_custom_call.1} parent=1 // pred_fallthru
      _
    // Predicated region
    $region10: #{tpu_custom_call.1} parent=1 // pred_check
      _
    $region11: #{tpu_custom_call.1} parent=1 // pred_check_branch
      %41 = sbr.rel (0) target = $region13
    $region12: #{tpu_custom_call.1} parent=1 // pred_region
      %43 = vsyncadd [#allocation6], 0
      %s44 = sshll.u32 %s2, 4
      %s45 = int_to_ptr.hbm [resolvable:$true] %s44
      %s46 = sshll.u32 [#allocation7], 4
      %s47 = int_to_ptr.vmem [resolvable:$true] %s46
      %52 = dma.hbm_to_vmem [thread:$0]  %s45, 1024, %s47, [#allocation6], 64, 64, 4
    $region13: #{tpu_custom_call.1} parent=1 // pred_fallthru
      _
    // Predicated region
    $region14: #{tpu_custom_call.1} parent=1 // pred_check
      _
    $region15: #{tpu_custom_call.1} parent=1 // pred_check_branch
      %54 = sbr.rel (0) target = $region17
    $region16: #{tpu_custom_call.1} parent=1 // pred_region
      _
    $region17: #{tpu_custom_call.1} parent=1 // pred_fallthru
      _
    // Predicated region
    $region18: #{tpu_custom_call.1} parent=1 // pred_check
      _
    $region19: #{tpu_custom_call.1} parent=1 // pred_check_branch
      %56 = sbr.rel (0) target = $region21
    $region20: #{tpu_custom_call.1} parent=1 // pred_region
      %58 = dma.done [#allocation3], 64
    $region21: #{tpu_custom_call.1} parent=1 // pred_fallthru
      _
    // Predicated region
    $region22: #{tpu_custom_call.1} parent=1 // pred_check
      _
    $region23: #{tpu_custom_call.1} parent=1 // pred_check_branch
      %60 = sbr.rel (0) target = $region25
    $region24: #{tpu_custom_call.1} parent=1 // pred_region
      %62 = dma.done [#allocation6], 1024
    $region25: #{tpu_custom_call.1} parent=1 // pred_fallthru
      _
    // Predicated region
    $region26: #{tpu_custom_call.1} parent=1 // pred_check
      _
    $region27: #{tpu_custom_call.1} parent=1 // pred_check_branch
      %64 = sbr.rel (0) target = $region29
    $region28: #{tpu_custom_call.1} parent=1 // pred_region
      %66 = dma.done [#allocation6], 1024
    $region29: #{tpu_custom_call.1} parent=1 // pred_fallthru
      _
    %v67 = vld [vmem:[#allocation7] sm:$0xf]
    %v68 = vld [vmem:[#allocation7 + $0x4] sm:$0xf]
    %v69 = vld [vmem:[#allocation7 + $0x8] sm:$0xf]
    %v70 = vld [vmem:[#allocation7 + $0xc] sm:$0xf]
    %v71 = vld [vmem:[#allocation7 + $0x10] sm:$0xf]
    %v72 = vld [vmem:[#allocation7 + $0x14] sm:$0xf]
    %v73 = vld [vmem:[#allocation7 + $0x18] sm:$0xf]
    %v74 = vld [vmem:[#allocation7 + $0x1c] sm:$0xf]
    %v75 = vld [vmem:[#allocation7 + $0x20] sm:$0xf]
    %v76 = vld [vmem:[#allocation7 + $0x24] sm:$0xf]
    %v77 = vld [vmem:[#allocation7 + $0x28] sm:$0xf]
    %v78 = vld [vmem:[#allocation7 + $0x2c] sm:$0xf]
    %v79 = vld [vmem:[#allocation7 + $0x30] sm:$0xf]
    %v80 = vld [vmem:[#allocation7 + $0x34] sm:$0xf]
    %v81 = vld [vmem:[#allocation7 + $0x38] sm:$0xf]
    %v82 = vld [vmem:[#allocation7 + $0x3c] sm:$0xf]
    %v83 = vld [vmem:[%s3] sm:$0x1]
    %v84 = vld [vmem:[#allocation2] sm:$0xf]
    %v86 = vperm.slane %v83, 0
    %v104 = vunpack.c.l.b16 %v67
    %v105 = vunpack.c.l.b16 %v68
    %v106 = vunpack.c.l.b16 %v69
    %v107 = vunpack.c.l.b16 %v70
    %v108 = vunpack.c.l.b16 %v71
    %v109 = vunpack.c.l.b16 %v72
    %v110 = vunpack.c.l.b16 %v73
    %v111 = vunpack.c.l.b16 %v74
    %v112 = vunpack.c.l.b16 %v75
    %v113 = vunpack.c.l.b16 %v76
    %v114 = vunpack.c.l.b16 %v77
    %v115 = vunpack.c.l.b16 %v78
    %v116 = vunpack.c.l.b16 %v79
    %v117 = vunpack.c.l.b16 %v80
    %v118 = vunpack.c.l.b16 %v81
    %v119 = vunpack.c.l.b16 %v82
    %v120 = vpack.c.b16 %v105, %v104
    %v121 = vpack.c.b16 %v107, %v106
    %v122 = vpack.c.b16 %v109, %v108
    %v123 = vpack.c.b16 %v111, %v110
    %v124 = vpack.c.b16 %v113, %v112
    %v125 = vpack.c.b16 %v115, %v114
    %v126 = vpack.c.b16 %v117, %v116
    %v127 = vpack.c.b16 %v119, %v118
    %136 = vmatpush.bf16.msra.mxu0 %v127
    %137 = vmatpush.bf16.msra.mxu0 %v126
    %138 = vmatpush.bf16.msra.mxu0 %v125
    %139 = vmatpush.bf16.msra.mxu0 %v124
    %140 = vmatpush.bf16.msra.mxu0 %v123
    %141 = vmatpush.bf16.msra.mxu0 %v122
    %142 = vmatpush.bf16.msra.mxu0 %v121
    %143 = vmatpush.bf16.msra.mxu0 %v120
    %144 = vmatmul.bf16.gmra.mxu0 %v84
    %v145 = vpop.f32.mrf.mxu0
    %v146 = vadd.f32 %v86, %v145
    %v147 = vpop.f32.mrf.mxu0
    %148 = vdwg.mxu0
    %v149 = vtanh.pop %v146
    %v150 = vld [vmem:[#allocation5] sm:$0xf]
    %v151 = vld [vmem:[#allocation5 + $0x4] sm:$0xf]
    %v152 = vld [vmem:[#allocation5 + $0x8] sm:$0xf]
    %v153 = vld [vmem:[#allocation5 + $0xc] sm:$0xf]
    %v154 = vld [vmem:[#allocation5 + $0x10] sm:$0xf]
    %v155 = vld [vmem:[#allocation5 + $0x14] sm:$0xf]
    %v156 = vld [vmem:[#allocation5 + $0x18] sm:$0xf]
    %v157 = vld [vmem:[#allocation5 + $0x1c] sm:$0xf]
    %v158 = vld [vmem:[#allocation5 + $0x20] sm:$0xf]
    %v159 = vld [vmem:[#allocation5 + $0x24] sm:$0xf]
    %v160 = vld [vmem:[#allocation5 + $0x28] sm:$0xf]
    %v161 = vld [vmem:[#allocation5 + $0x2c] sm:$0xf]
    %v162 = vld [vmem:[#allocation5 + $0x30] sm:$0xf]
    %v163 = vld [vmem:[#allocation5 + $0x34] sm:$0xf]
    %v164 = vld [vmem:[#allocation5 + $0x38] sm:$0xf]
    %v165 = vld [vmem:[#allocation5 + $0x3c] sm:$0xf]
    %v182 = vunpack.c.l.b16 %v150
    %v183 = vunpack.c.l.b16 %v151
    %v184 = vunpack.c.l.b16 %v152
    %v185 = vunpack.c.l.b16 %v153
    %v186 = vunpack.c.l.b16 %v154
    %v187 = vunpack.c.l.b16 %v155
    %v188 = vunpack.c.l.b16 %v156
    %v189 = vunpack.c.l.b16 %v157
    %v190 = vunpack.c.l.b16 %v158
    %v191 = vunpack.c.l.b16 %v159
    %v192 = vunpack.c.l.b16 %v160
    %v193 = vunpack.c.l.b16 %v161
    %v194 = vunpack.c.l.b16 %v162
    %v195 = vunpack.c.l.b16 %v163
    %v196 = vunpack.c.l.b16 %v164
    %v197 = vunpack.c.l.b16 %v165
    %v198 = vpack.c.b16 %v183, %v182
    %v199 = vpack.c.b16 %v185, %v184
    %v200 = vpack.c.b16 %v187, %v186
    %v201 = vpack.c.b16 %v189, %v188
    %v202 = vpack.c.b16 %v191, %v190
    %v203 = vpack.c.b16 %v193, %v192
    %v204 = vpack.c.b16 %v195, %v194
    %v205 = vpack.c.b16 %v197, %v196
    %214 = vmatpush.bf16.msra.mxu0 %v127
    %215 = vmatpush.bf16.msra.mxu0 %v126
    %216 = vmatpush.bf16.msra.mxu0 %v125
    %217 = vmatpush.bf16.msra.mxu0 %v124
    %218 = vmatpush.bf16.msra.mxu0 %v123
    %219 = vmatpush.bf16.msra.mxu0 %v122
    %220 = vmatpush.bf16.msra.mxu0 %v121
    %221 = vmatpush.bf16.msra.mxu0 %v120
    %222 = vmatmul.bf16.gmra.mxu0 %v198
    %v223 = vpop.f32.mrf.mxu0
    %v224 = vadd.f32 %v86, %v223
    %v225 = vpop.f32.mrf.mxu0
    %v226 = vadd.f32 %v86, %v225
    %227 = vmatmul.bf16.gmra.mxu0 %v199
    %v228 = vpop.f32.mrf.mxu0
    %v229 = vadd.f32 %v86, %v228
    %v230 = vpop.f32.mrf.mxu0
    %v231 = vadd.f32 %v86, %v230
    %232 = vmatmul.bf16.gmra.mxu0 %v200
    %v233 = vpop.f32.mrf.mxu0
    %v234 = vadd.f32 %v86, %v233
    %v235 = vpop.f32.mrf.mxu0
    %v236 = vadd.f32 %v86, %v235
    %237 = vmatmul.bf16.gmra.mxu0 %v201
    %v238 = vpop.f32.mrf.mxu0
    %v239 = vadd.f32 %v86, %v238
    %v240 = vpop.f32.mrf.mxu0
    %v241 = vadd.f32 %v86, %v240
    %242 = vmatmul.bf16.gmra.mxu0 %v202
    %v243 = vpop.f32.mrf.mxu0
    %v244 = vadd.f32 %v86, %v243
    %v245 = vpop.f32.mrf.mxu0
    %v246 = vadd.f32 %v86, %v245
    %247 = vmatmul.bf16.gmra.mxu0 %v203
    %v248 = vpop.f32.mrf.mxu0
    %v249 = vadd.f32 %v86, %v248
    %v250 = vpop.f32.mrf.mxu0
    %v251 = vadd.f32 %v86, %v250
    %252 = vmatmul.bf16.gmra.mxu0 %v204
    %v253 = vpop.f32.mrf.mxu0
    %v254 = vadd.f32 %v86, %v253
    %v255 = vpop.f32.mrf.mxu0
    %v256 = vadd.f32 %v86, %v255
    %257 = vmatmul.bf16.gmra.mxu0 %v205
    %v258 = vpop.f32.mrf.mxu0
    %v259 = vadd.f32 %v86, %v258
    %v260 = vpop.f32.mrf.mxu0
    %v261 = vadd.f32 %v86, %v260
    %262 = vdwg.mxu0
    %v263 = vtanh.pop %v224
    %v264 = vtanh.pop %v226
    %v265 = vtanh.pop %v229
    %v266 = vtanh.pop %v231
    %v267 = vtanh.pop %v234
    %v268 = vtanh.pop %v236
    %v269 = vtanh.pop %v239
    %v270 = vtanh.pop %v241
    %v271 = vtanh.pop %v244
    %v272 = vtanh.pop %v246
    %v273 = vtanh.pop %v249
    %v274 = vtanh.pop %v251
    %v275 = vtanh.pop %v254
    %v276 = vtanh.pop %v256
    %v277 = vtanh.pop %v259
    %v278 = vtanh.pop %v261
    %279 = vst [vmem:[#allocation8] sm:$0xff] %v149
    %280 = vst [vmem:[#allocation9] sm:$0xff] %v263
    %281 = vst [vmem:[#allocation9 + $0x8] sm:$0xff] %v264
    %282 = vst [vmem:[#allocation9 + $0x10] sm:$0xff] %v265
    %283 = vst [vmem:[#allocation9 + $0x18] sm:$0xff] %v266
    %284 = vst [vmem:[#allocation9 + $0x20] sm:$0xff] %v267
    %285 = vst [vmem:[#allocation9 + $0x28] sm:$0xff] %v268
    %286 = vst [vmem:[#allocation9 + $0x30] sm:$0xff] %v269
    %287 = vst [vmem:[#allocation9 + $0x38] sm:$0xff] %v270
    %288 = vst [vmem:[#allocation9 + $0x40] sm:$0xff] %v271
    %289 = vst [vmem:[#allocation9 + $0x48] sm:$0xff] %v272
    %290 = vst [vmem:[#allocation9 + $0x50] sm:$0xff] %v273
    %291 = vst [vmem:[#allocation9 + $0x58] sm:$0xff] %v274
    %292 = vst [vmem:[#allocation9 + $0x60] sm:$0xff] %v275
    %293 = vst [vmem:[#allocation9 + $0x68] sm:$0xff] %v276
    %294 = vst [vmem:[#allocation9 + $0x70] sm:$0xff] %v277
    %295 = vst [vmem:[#allocation9 + $0x78] sm:$0xff] %v278
    %v296 = vpack.c.bf16 %v149, %v149
    %v297 = vpack.c.bf16 %v264, %v263
    %v298 = vpack.c.bf16 %v266, %v265
    %v299 = vpack.c.bf16 %v268, %v267
    %v300 = vpack.c.bf16 %v270, %v269
    %v301 = vpack.c.bf16 %v272, %v271
    %v302 = vpack.c.bf16 %v274, %v273
    %v303 = vpack.c.bf16 %v276, %v275
    %v304 = vpack.c.bf16 %v278, %v277
    %305 = vmatpush.bf16.xpose.msra.mxu0 %v304
    %306 = vmatpush.bf16.xpose.msra.mxu0 %v303
    %307 = vmatpush.bf16.xpose.msra.mxu0 %v302
    %308 = vmatpush.bf16.xpose.msra.mxu0 %v301
    %309 = vmatpush.bf16.xpose.msra.mxu0 %v300
    %310 = vmatpush.bf16.xpose.msra.mxu0 %v299
    %311 = vmatpush.bf16.xpose.msra.mxu0 %v298
    %312 = vmatpush.bf16.xpose.msra.mxu0 %v297
    %313 = vmatmul.bf16.gmra.mxu0 %v296
    %v314 = vpop.f32.mrf.mxu0
    %v315 = vadd.f32 0.0, %v314
    %v316 = vpop.f32.mrf.mxu0
    %317 = vdwg.mxu0
    %318 = vst [vmem:[#allocation11] sm:$0xff] %v315
    // Predicated region
    $region30: #{tpu_custom_call.1} parent=1 // pred_check
      _
    $region31: #{tpu_custom_call.1} parent=1 // pred_check_branch
      %320 = sbr.rel (0) target = $region33
    $region32: #{tpu_custom_call.1} parent=1 // pred_region
      %322 = vsyncadd [#allocation4], 0
      %s324 = sshll.u32 [#allocation8], 4
      %s325 = int_to_ptr.vmem [resolvable:$true] %s324
      %s326 = sshll.u32 %s4, 4
      %s327 = int_to_ptr.hbm [resolvable:$true] %s326
      %329 = dma.vmem_to_hbm [thread:$0]  %s325, 128, %s327, [#allocation4]
    $region33: #{tpu_custom_call.1} parent=1 // pred_fallthru
      _
    // Predicated region
    $region34: #{tpu_custom_call.1} parent=1 // pred_check
      _
    $region35: #{tpu_custom_call.1} parent=1 // pred_check_branch
      %331 = sbr.rel (0) target = $region37
    $region36: #{tpu_custom_call.1} parent=1 // pred_region
      %333 = vsyncadd [#allocation10], 0
      %s334 = sshll.u32 [#allocation9], 4
      %s335 = int_to_ptr.vmem [resolvable:$true] %s334
      %s336 = sshll.u32 %s5, 4
      %s337 = int_to_ptr.hbm [resolvable:$true] %s336
      %342 = dma.vmem_to_hbm [thread:$0]  %s335, 2048, %s337, [#allocation10], 128, 128, 8
    $region37: #{tpu_custom_call.1} parent=1 // pred_fallthru
      _
    // Predicated region
    $region38: #{tpu_custom_call.1} parent=1 // pred_check
      _
    $region39: #{tpu_custom_call.1} parent=1 // pred_check_branch
      %344 = sbr.rel (0) target = $region41
    $region40: #{tpu_custom_call.1} parent=1 // pred_region
      %346 = vsyncadd [#allocation10], 0
      %s348 = sshll.u32 [#allocation11], 4
      %s349 = int_to_ptr.vmem [resolvable:$true] %s348
      %s350 = sshll.u32 %s6, 4
      %s351 = int_to_ptr.hbm [resolvable:$true] %s350
      %353 = dma.vmem_to_hbm [thread:$0]  %s349, 128, %s351, [#allocation10]
    $region41: #{tpu_custom_call.1} parent=1 // pred_fallthru
      _
    // Predicated region
    $region42: #{tpu_custom_call.1} parent=1 // pred_check
      _
    $region43: #{tpu_custom_call.1} parent=1 // pred_check_branch
      %355 = sbr.rel (0) target = $region45
    $region44: #{tpu_custom_call.1} parent=1 // pred_region
      %357 = dma.done [#allocation4], 128
    $region45: #{tpu_custom_call.1} parent=1 // pred_fallthru
      _
    // Predicated region
    $region46: #{tpu_custom_call.1} parent=1 // pred_check
      _
    $region47: #{tpu_custom_call.1} parent=1 // pred_check_branch
      %359 = sbr.rel (0) target = $region49
    $region48: #{tpu_custom_call.1} parent=1 // pred_region
      %361 = dma.done [#allocation10], 2048
    $region49: #{tpu_custom_call.1} parent=1 // pred_fallthru
      _
    // Predicated region
    $region50: #{tpu_custom_call.1} parent=1 // pred_check
      _
    $region51: #{tpu_custom_call.1} parent=1 // pred_check_branch
      %363 = sbr.rel (0) target = $region53
    $region52: #{tpu_custom_call.1} parent=1 // pred_region
      %365 = dma.done [#allocation10], 128
    $region53: #{tpu_custom_call.1} parent=1 // pred_fallthru
      _
    %366 = vsyncpa [#allocation3], 1
    %367 = vsyncpa [#allocation6], 1
    %368 = vsyncpa [#allocation4], 1
    %369 = vsyncpa [#allocation10], 1

</llo_original>
